<compile_context>
chip_gen: v7x
topology: tpu7x:2x2x1
jax: 0.10.0
libtpu: 0.0.40
codegen_flags: <defaults>
</compile_context>

<pallas_src>
import math
import functools

import jax
import jax.numpy as jnp
from jax.experimental import pallas as pl
from jax.experimental.pallas import tpu as pltpu


def _round_up(v, m):
    return ((v + m - 1) // m) * m


def _pad_to(arr, shape, dtype):
    arr = arr.astype(dtype)
    if arr.shape == tuple(shape):
        return arr
    out = jnp.zeros(shape, dtype)
    return out.at[tuple(slice(0, s) for s in arr.shape)].set(arr)


# ---------------------------------------------------------------------------
# Kernel 1: projection.  h = x @ W,  f = h @ [a1 | a2]  (one fused mat-vec).
# ---------------------------------------------------------------------------
def _project_kernel(x_ref, w_ref, a_ref, h_ref, f_ref):
    h = jnp.dot(x_ref[...], w_ref[...], preferred_element_type=jnp.float32)
    h_ref[...] = h.astype(h_ref.dtype)
    # f[:, 0] = h . a1 , f[:, 1] = h . a2  -> single (T,Fp)@(Fp,2) MXU call
    f_ref[...] = jnp.dot(h, a_ref[...],
                         preferred_element_type=jnp.float32).astype(f_ref.dtype)


# ---------------------------------------------------------------------------
# Kernel 2: flash-style online-softmax attention over adjacency tiles.
#   e[q,k] = leakyrelu(f1[q] + f2[k]); masked by adj; row-softmax; att @ h; ELU.
# ---------------------------------------------------------------------------
def _gat_attn_kernel(f1_ref, f2t_ref, hk_ref, mask_ref, out_ref,
                     m_ref, l_ref, acc_ref, *, alpha):
    j = pl.program_id(1)

    @pl.when(j == 0)
    def _():
        m_ref[...] = jnp.full(m_ref.shape, -jnp.inf, m_ref.dtype)
        l_ref[...] = jnp.zeros(l_ref.shape, l_ref.dtype)
        acc_ref[...] = jnp.zeros(acc_ref.shape, acc_ref.dtype)

    # logits for this (TQ, TK) tile
    e = f1_ref[...] + f2t_ref[...]                    # (TQ,1)+(1,TK) -> (TQ,TK)
    e = jnp.where(e > 0, e, alpha * e)                # LeakyReLU(alpha)
    e = jnp.where(mask_ref[...] > 0, e, -9e15)        # adjacency mask, scalar fill

    # online softmax update
    m_prev = m_ref[...]
    m_new = jnp.maximum(m_prev, jnp.max(e, axis=1, keepdims=True))
    corr = jnp.exp(m_prev - m_new)
    p = jnp.exp(e - m_new)
    l_ref[...] = corr * l_ref[...] + jnp.sum(p, axis=1, keepdims=True)
    acc_ref[...] = corr * acc_ref[...] + jnp.dot(
        p.astype(hk_ref.dtype), hk_ref[...], preferred_element_type=jnp.float32)
    m_ref[...] = m_new

    @pl.when(j == pl.num_programs(1) - 1)
    def _():
        h_prime = acc_ref[...] * pl.reciprocal(l_ref[...], approx=True)
        # concat=True -> ELU (expm1 for accuracy on small negatives)
        out_ref[...] = jnp.where(h_prime > 0, h_prime,
                                 jnp.expm1(h_prime)).astype(out_ref.dtype)


# ---------------------------------------------------------------------------
# Wrapper
# ---------------------------------------------------------------------------
def gat_forward(x, W, a, adj, *, alpha, block=512, compute_dtype=jnp.float32):
    """GAT layer forward (eval mode, concat=True).  Matches the PyTorch module."""
    N, F_in = x.shape
    F_out = W.shape[1]

    # Fuse the two attention mat-vecs: a (2*F_out, 1) -> (F_out, 2)
    a2col = a.reshape(2, F_out).T.astype(jnp.float32)     # col0 = a1, col1 = a2

    # Tile size / padding.  block=512 keeps the streamed footprint well inside
    # the v7x 64 MiB VMEM while still giving HBM-roofline behaviour on v5e/v6e.
    T = min(block, _round_up(N, 8))
    Np = _round_up(N, T)
    Fp = _round_up(F_out, 128)        # lane-dense h / output / accumulator

    x_p = _pad_to(x, (Np, F_in), jnp.float32)
    W_p = _pad_to(W, (F_in, Fp), jnp.float32)
    a_p = _pad_to(a2col, (Fp, 2), jnp.float32)
    # exact 0/1 mask in a compact dtype (halves HBM traffic of the N^2 operand)
    mask_p = _pad_to((adj > 0).astype(jnp.bfloat16), (Np, Np), jnp.bfloat16)

    grid_rows = Np // T

    # ---- kernel 1: h and fused logit features, row-tiled --------------------
    h, f = pl.pallas_call(
        _project_kernel,
        out_shape=(jax.ShapeDtypeStruct((Np, Fp), compute_dtype),
                   jax.ShapeDtypeStruct((Np, 2), jnp.float32)),
        grid=(grid_rows,),
        in_specs=[
            pl.BlockSpec((T, F_in), lambda i: (i, 0)),
            pl.BlockSpec((F_in, Fp), lambda i: (0, 0)),
            pl.BlockSpec((Fp, 2), lambda i: (0, 0)),
        ],
        out_specs=(pl.BlockSpec((T, Fp), lambda i: (i, 0)),
                   pl.BlockSpec((T, 2), lambda i: (i, 0))),
        compiler_params=pltpu.CompilerParams(
            dimension_semantics=("parallel",)),
    )(x_p, W_p, a_p)

    f1 = f[:, 0:1]            # (Np, 1)  query-side term
    f2t = f[:, 1:2].T         # (1, Np)  key-side term, lane-major (no in-kernel transpose)

    # ---- VMEM budget (double-buffered streams + accumulators) ---------------
    itemsize = jnp.dtype(compute_dtype).itemsize
    bytes_needed = (
        2 * T * T * 2               # adjacency-mask tiles (bf16), double-buffered
        + 2 * T * Fp * itemsize     # h_k tiles
        + 2 * T * Fp * 4            # output block
        + T * (Fp + 2) * 4          # scratch accumulators (acc, m, l)
        + 4 * T * 4                 # f1 / f2t tiles
    )
    vmem_limit = int(min(max(2 * bytes_needed, 16 * 1024 * 1024),
                         48 * 1024 * 1024))

    # ---- kernel 2: tiled online-softmax attention ----------------------------
    out_p = pl.pallas_call(
        functools.partial(_gat_attn_kernel, alpha=alpha),
        out_shape=jax.ShapeDtypeStruct((Np, Fp), jnp.float32),
        grid=(grid_rows, grid_rows),              # (query blocks, key blocks)
        in_specs=[
            pl.BlockSpec((T, 1), lambda i, j: (i, 0)),     # f1 (query rows)
            pl.BlockSpec((1, T), lambda i, j: (0, j)),     # f2^T (key cols)
            pl.BlockSpec((T, Fp), lambda i, j: (j, 0)),    # h_k block
            pl.BlockSpec((T, T), lambda i, j: (i, j)),     # adjacency mask tile
        ],
        out_specs=pl.BlockSpec((T, Fp), lambda i, j: (i, 0)),
        scratch_shapes=[
            pltpu.VMEM((T, 1), jnp.float32),    # running max
            pltpu.VMEM((T, 1), jnp.float32),    # running denominator
            pltpu.VMEM((T, Fp), jnp.float32),   # running numerator
        ],
        compiler_params=pltpu.CompilerParams(
            dimension_semantics=("parallel", "arbitrary"),
            vmem_limit_bytes=vmem_limit),
    )(f1, f2t, h, mask_p)

    return out_p[:N, :F_out]


# ---------------------------------------------------------------------------
# Reference + init helpers
# ---------------------------------------------------------------------------
def xavier_uniform(key, shape, gain):
    fan_in, fan_out = shape[0], shape[1]
    bound = gain * math.sqrt(6.0 / (fan_in + fan_out))
    return jax.random.uniform(key, shape, jnp.float32, -bound, bound)


def reference_forward(x, W, a, adj, *, out_features, alpha):
    # pure-JAX reference identical to the PyTorch forward (eval mode)
    h = x @ W
    N = h.shape[0]
    a_input = jnp.concatenate(
        [jnp.repeat(h, N, axis=0), jnp.tile(h, (N, 1))], axis=1
    ).reshape(N, N, 2 * out_features)
    e = (a_input @ a)[..., 0]
    e = jnp.where(e > 0, e, alpha * e)
    att = jnp.where(adj > 0, e, jnp.full_like(e, -9e15))
    att = jax.nn.softmax(att, axis=1)
    h_prime = att @ h
    return jax.nn.elu(h_prime)


def _make_inputs(key, N, F_in, F_out):
    k_x, k_w, k_a, k_adj = jax.random.split(key, 4)
    x = jax.random.normal(k_x, (N, F_in), jnp.float32)
    W = xavier_uniform(k_w, (F_in, F_out), gain=1.414)
    a = xavier_uniform(k_a, (2 * F_out, 1), gain=1.414)
    adj = (jax.random.uniform(k_adj, (N, N)) > 0.5).astype(jnp.float32)
    adj = jnp.maximum(adj, jnp.eye(N, dtype=jnp.float32))   # self-loops
    return x, W, a, adj


if __name__ == "__main__":
    ALPHA = 0.2
    key = jax.random.PRNGKey(0)
    k_small, k_big = jax.random.split(key)

    # --- small shapes consistent with the module (N=8 nodes, 16 -> 32) ------
    N, F_IN, F_OUT = 8, 16, 32
    x, W, a, adj = _make_inputs(k_small, N, F_IN, F_OUT)
    out = jax.block_until_ready(gat_forward(x, W, a, adj, alpha=ALPHA))
    ref = reference_forward(x, W, a, adj, out_features=F_OUT, alpha=ALPHA)
    assert out.shape == (N, F_OUT)
    assert jnp.allclose(out, ref, atol=2e-3, rtol=2e-3), (
        f"small: max abs err = {jnp.max(jnp.abs(out - ref))}"
    )

    # --- larger graph to exercise the tiled / online-softmax path (2x2 grid) -
    N2 = 640
    x2, W2, a2, adj2 = _make_inputs(k_big, N2, F_IN, F_OUT)
    out2 = jax.block_until_ready(gat_forward(x2, W2, a2, adj2, alpha=ALPHA))
    ref2 = reference_forward(x2, W2, a2, adj2, out_features=F_OUT, alpha=ALPHA)
    assert out2.shape == (N2, F_OUT)
    assert jnp.allclose(out2, ref2, atol=2e-3, rtol=2e-3), (
        f"tiled: max abs err = {jnp.max(jnp.abs(out2 - ref2))}"
    )

    print("KERNEL_OK")
</pallas_src>

<mosaic_0001>
module attributes {stable_mosaic.version = 11 : i64} {
  func.func @_project_kernel(%arg0: i32, %arg1: memref<8x16xf32, #tpu.memory_space<vmem>>, %arg2: memref<16x128xf32, #tpu.memory_space<vmem>>, %arg3: memref<128x2xf32, #tpu.memory_space<vmem>>, %arg4: memref<8x128xf32, #tpu.memory_space<vmem>>, %arg5: memref<8x2xf32, #tpu.memory_space<vmem>>) attributes {dimension_semantics = [#tpu.dimension_semantics<parallel>], iteration_bounds = array<i64: 1>, scalar_prefetch = 0 : i64, scratch_operands = 0 : i64, tpu.core_type = #tpu.core_type<tc>, window_params = [{transform_indices = @transform_0, window_bounds = array<i64: 8, 16>}, {pipeline_mode = #tpu.pipeline_mode<synchronous>, transform_indices = @transform_1, window_bounds = array<i64: 16, 128>}, {pipeline_mode = #tpu.pipeline_mode<synchronous>, transform_indices = @transform_2, window_bounds = array<i64: 128, 2>}, {transform_indices = @transform_3, window_bounds = array<i64: 8, 128>}, {transform_indices = @transform_4, window_bounds = array<i64: 8, 2>}]} {
    %c0 = arith.constant 0 : index
    %c0_0 = arith.constant 0 : index
    %0 = vector.load %arg1[%c0, %c0_0] : memref<8x16xf32, #tpu.memory_space<vmem>>, vector<8x16xf32>
    %c0_1 = arith.constant 0 : index
    %c0_2 = arith.constant 0 : index
    %1 = vector.load %arg2[%c0_1, %c0_2] : memref<16x128xf32, #tpu.memory_space<vmem>>, vector<16x128xf32>
    %cst = arith.constant dense<0.000000e+00> : vector<8x128xf32>
    %2 = tpu.matmul %0, %1, %cst {dimension_numbers = #tpu.dot_dimension_numbers<[1], [0], [0], [1], [0, 0, 1, 1], [], []>} : vector<8x16xf32>, vector<16x128xf32>, vector<8x128xf32> -> vector<8x128xf32>
    %c0_3 = arith.constant 0 : index
    %c0_4 = arith.constant 0 : index
    %3 = vector.load %arg4[%c0_3, %c0_4] : memref<8x128xf32, #tpu.memory_space<vmem>>, vector<8x128xf32>
    tpu.vector_store %arg4[%c0_3, %c0_4], %2 {strides = array<i32>} : memref<8x128xf32, #tpu.memory_space<vmem>>, vector<8x128xf32>,
    %c0_5 = arith.constant 0 : index
    %c0_6 = arith.constant 0 : index
    %4 = vector.load %arg3[%c0_5, %c0_6] : memref<128x2xf32, #tpu.memory_space<vmem>>, vector<128x2xf32>
    %cst_7 = arith.constant dense<0.000000e+00> : vector<8x2xf32>
    %5 = tpu.matmul %2, %4, %cst_7 {dimension_numbers = #tpu.dot_dimension_numbers<[1], [0], [0], [1], [0, 0, 1, 1], [], []>} : vector<8x128xf32>, vector<128x2xf32>, vector<8x2xf32> -> vector<8x2xf32>
    %c0_8 = arith.constant 0 : index
    %c0_9 = arith.constant 0 : index
    %6 = vector.load %arg5[%c0_8, %c0_9] : memref<8x2xf32, #tpu.memory_space<vmem>>, vector<8x2xf32>
    tpu.vector_store %arg5[%c0_8, %c0_9], %5 {strides = array<i32>} : memref<8x2xf32, #tpu.memory_space<vmem>>, vector<8x2xf32>,
    return
  }
  func.func @transform_0(%arg0: i32) -> (i32, i32) {
    %c0_i32 = arith.constant 0 : i32
    %c0_i32_0 = arith.constant 0 : i32
    return %arg0, %c0_i32 : i32, i32
  }
  func.func @transform_1(%arg0: i32) -> (i32, i32) {
    %c0_i32 = arith.constant 0 : i32
    %c0_i32_0 = arith.constant 0 : i32
    %c0_i32_1 = arith.constant 0 : i32
    return %c0_i32, %c0_i32_0 : i32, i32
  }
  func.func @transform_2(%arg0: i32) -> (i32, i32) {
    %c0_i32 = arith.constant 0 : i32
    %c0_i32_0 = arith.constant 0 : i32
    %c0_i32_1 = arith.constant 0 : i32
    return %c0_i32, %c0_i32_0 : i32, i32
  }
  func.func @transform_3(%arg0: i32) -> (i32, i32) {
    %c0_i32 = arith.constant 0 : i32
    %c0_i32_0 = arith.constant 0 : i32
    return %arg0, %c0_i32 : i32, i32
  }
  func.func @transform_4(%arg0: i32) -> (i32, i32) {
    %c0_i32 = arith.constant 0 : i32
    %c0_i32_0 = arith.constant 0 : i32
    return %arg0, %c0_i32 : i32, i32
  }
}

</mosaic_0001>

<llo_original>
// kernel: tpu_custom_call.1
$region0: #{tpu_custom_call.1}
  #allocation0 [shape = 'u32[]', space=smem, size = 0x4, offset = 0x4, fixed_abs, tag = 'smem constant byte address 0x4 - core index']
  #allocation1 [shape = 'u32[144,128]{1,0:T(1,128)}', space=vmem, size = 0x12000, scoped, tag = 'internal scratch']
  %s0 = inlined_call_operand.vmem [shape: f32[8,16], index: 0, kind: input, shape index: {}]
  %s1 = inlined_call_operand.vmem [shape: f32[16,128], index: 1, kind: input, shape index: {}]
  %s2 = inlined_call_operand.vmem [shape: f32[128,2], index: 2, kind: input, shape index: {}]
  %s3 = inlined_call_operand.hbm [shape: f32[8,128], index: 3, kind: output, shape index: {0}]
  %s4 = inlined_call_operand.vmem [shape: f32[8,2], index: 4, kind: output, shape index: {1}]
  %5 = xla_tuple %s3, %s4
  %s6 = sld [smem:[#allocation0]]
  $region30: #{tpu_custom_call.1} parent=0
    _
  %s8 = ssub.s32 1, %s6
  %s9 = scalar_select 0, %s8, %s6
  $region1: #{tpu_custom_call.1} parent=0
    #allocation2 [shape = 'u8[4096]{0}', space=vmem, size = 0x1000, scoped, tag = 'output window, operand 0, single buffered']
    #allocation3 [shape = 's32[1]{0}', space=sflag, size = 0x4, scoped, tag = 'scoped memory for tpu_custom_call.1']
    %10 = vsyncpa [#allocation3], 0
    // Predicated region
    $region2: #{tpu_custom_call.1} parent=1 // pred_check
      _
    $region3: #{tpu_custom_call.1} parent=1 // pred_check_branch
      %12 = sbr.rel (0) target = $region5
    $region4: #{tpu_custom_call.1} parent=1 // pred_region
      _
    $region5: #{tpu_custom_call.1} parent=1 // pred_fallthru
      _
    // Predicated region
    $region6: #{tpu_custom_call.1} parent=1 // pred_check
      _
    $region7: #{tpu_custom_call.1} parent=1 // pred_check_branch
      %14 = sbr.rel (0) target = $region9
    $region8: #{tpu_custom_call.1} parent=1 // pred_region
      _
    $region9: #{tpu_custom_call.1} parent=1 // pred_fallthru
      _
    // Predicated region
    $region10: #{tpu_custom_call.1} parent=1 // pred_check
      _
    $region11: #{tpu_custom_call.1} parent=1 // pred_check_branch
      %16 = sbr.rel (0) target = $region13
    $region12: #{tpu_custom_call.1} parent=1 // pred_region
      _
    $region13: #{tpu_custom_call.1} parent=1 // pred_fallthru
      _
    %v17 = vld [vmem:[%s0] sm:$0xff]
    %v18 = vld [vmem:[%s1] sm:$0xff]
    %v19 = vld [vmem:[%s1 + $0x8] sm:$0xff]
    %vm20 = vcmask 130048
    %v22 = vsel %vm20, %v17, 0
    %24 = vmatprep.subr.mxu0 0.0
    %25 = vmatpush1.msra.mxu0 %v18
    %26 = vmatprep.subr.mxu0 0.0
    %27 = vmatpush1.msra.mxu0 %v19
    %28 = vmatprep.subr.mxu0 0.0
    %29 = vmatpush1.msra.mxu0 0.0
    %30 = vmatprep.subr.mxu0 0.0
    %31 = vmatpush1.msra.mxu0 0.0
    %32 = vmatprep.subr.mxu0 0.0
    %33 = vmatpush1.msra.mxu0 0.0
    %34 = vmatprep.subr.mxu0 0.0
    %35 = vmatpush1.msra.mxu0 0.0
    %36 = vmatprep.subr.mxu0 0.0
    %37 = vmatpush1.msra.mxu0 0.0
    %38 = vmatprep.subr.mxu0 0.0
    %39 = vmatpush1.msra.mxu0 0.0
    %40 = vmatprep.subr.mxu0 0.0
    %41 = vmatpush1.msra.mxu0 0.0
    %42 = vmatprep.subr.mxu0 0.0
    %43 = vmatpush1.msra.mxu0 0.0
    %44 = vmatprep.subr.mxu0 0.0
    %45 = vmatpush1.msra.mxu0 0.0
    %46 = vmatprep.subr.mxu0 0.0
    %47 = vmatpush1.msra.mxu0 0.0
    %48 = vmatprep.subr.mxu0 0.0
    %49 = vmatpush1.msra.mxu0 0.0
    %50 = vmatprep.subr.mxu0 0.0
    %51 = vmatpush1.msra.mxu0 0.0
    %52 = vmatprep.subr.mxu0 0.0
    %53 = vmatpush1.msra.mxu0 0.0
    %54 = vmatprep.subr.mxu0 0.0
    %55 = vmatpush1.msra.mxu0 0.0
    %56 = vmatprep.subr.mxu0 0.0
    %57 = vmatpush1.msra.mxu0 0.0
    %58 = vmatprep.subr.mxu0 0.0
    %59 = vmatpush1.msra.mxu0 0.0
    %60 = vmatprep.subr.mxu0 0.0
    %61 = vmatpush1.msra.mxu0 0.0
    %62 = vmatprep.subr.mxu0 0.0
    %63 = vmatpush1.msra.mxu0 0.0
    %64 = vmatprep.subr.mxu0 0.0
    %65 = vmatpush1.msra.mxu0 0.0
    %66 = vmatprep.subr.mxu0 0.0
    %67 = vmatpush1.msra.mxu0 0.0
    %68 = vmatprep.subr.mxu0 0.0
    %69 = vmatpush1.msra.mxu0 0.0
    %70 = vmatprep.subr.mxu0 0.0
    %71 = vmatpush1.msra.mxu0 0.0
    %72 = vmatprep.subr.mxu0 0.0
    %73 = vmatpush1.msra.mxu0 0.0
    %74 = vmatprep.subr.mxu0 0.0
    %75 = vmatpush1.msra.mxu0 0.0
    %76 = vmatprep.subr.mxu0 0.0
    %77 = vmatpush1.msra.mxu0 0.0
    %78 = vmatprep.subr.mxu0 0.0
    %79 = vmatpush1.msra.mxu0 0.0
    %80 = vmatprep.subr.mxu0 0.0
    %81 = vmatpush1.msra.mxu0 0.0
    %82 = vmatprep.subr.mxu0 0.0
    %83 = vmatpush1.msra.mxu0 0.0
    %84 = vmatprep.subr.mxu0 0.0
    %85 = vmatpush1.msra.mxu0 0.0
    %86 = vmatprep.subr.mxu0 0.0
    %87 = vmatpush1.msra.mxu0 0.0
    %88 = vmatprep.mubr.f32.mxu0 0.0
    %89 = vmatmul.mubr.f32.gmra.mrb[0].mxu0 %v22
    %v90 = vpop.f32.mrb[0].mxu0
    %v91 = vadd.f32 0.0, %v90
    %v92 = vpop.f32.mrb[0].mxu0
    %93 = vdwg.mxu0
    %94 = vst [vmem:[#allocation2] sm:$0xff] %v91
    %v95 = vld [vmem:[%s2] sm:$0xff]
    %v96 = vld [vmem:[%s2 + $0x8] sm:$0xff]
    %v97 = vld [vmem:[%s2 + $0x10] sm:$0xff]
    %v98 = vld [vmem:[%s2 + $0x18] sm:$0xff]
    %v99 = vld [vmem:[%s2 + $0x20] sm:$0xff]
    %v100 = vld [vmem:[%s2 + $0x28] sm:$0xff]
    %v101 = vld [vmem:[%s2 + $0x30] sm:$0xff]
    %v102 = vld [vmem:[%s2 + $0x38] sm:$0xff]
    %v103 = vld [vmem:[%s2 + $0x40] sm:$0xff]
    %v104 = vld [vmem:[%s2 + $0x48] sm:$0xff]
    %v105 = vld [vmem:[%s2 + $0x50] sm:$0xff]
    %v106 = vld [vmem:[%s2 + $0x58] sm:$0xff]
    %v107 = vld [vmem:[%s2 + $0x60] sm:$0xff]
    %v108 = vld [vmem:[%s2 + $0x68] sm:$0xff]
    %v109 = vld [vmem:[%s2 + $0x70] sm:$0xff]
    %v110 = vld [vmem:[%s2 + $0x78] sm:$0xff]
    %111 = vmatprep.subr.mxu0 0.0
    %112 = vmatpush1.msra.mxu0 %v95
    %113 = vmatprep.subr.mxu0 0.0
    %114 = vmatpush1.msra.mxu0 %v96
    %115 = vmatprep.subr.mxu0 0.0
    %116 = vmatpush1.msra.mxu0 %v97
    %117 = vmatprep.subr.mxu0 0.0
    %118 = vmatpush1.msra.mxu0 %v98
    %119 = vmatprep.subr.mxu0 0.0
    %120 = vmatpush1.msra.mxu0 %v99
    %121 = vmatprep.subr.mxu0 0.0
    %122 = vmatpush1.msra.mxu0 %v100
    %123 = vmatprep.subr.mxu0 0.0
    %124 = vmatpush1.msra.mxu0 %v101
    %125 = vmatprep.subr.mxu0 0.0
    %126 = vmatpush1.msra.mxu0 %v102
    %127 = vmatprep.subr.mxu0 0.0
    %128 = vmatpush1.msra.mxu0 %v103
    %129 = vmatprep.subr.mxu0 0.0
    %130 = vmatpush1.msra.mxu0 %v104
    %131 = vmatprep.subr.mxu0 0.0
    %132 = vmatpush1.msra.mxu0 %v105
    %133 = vmatprep.subr.mxu0 0.0
    %134 = vmatpush1.msra.mxu0 %v106
    %135 = vmatprep.subr.mxu0 0.0
    %136 = vmatpush1.msra.mxu0 %v107
    %137 = vmatprep.subr.mxu0 0.0
    %138 = vmatpush1.msra.mxu0 %v108
    %139 = vmatprep.subr.mxu0 0.0
    %140 = vmatpush1.msra.mxu0 %v109
    %141 = vmatprep.subr.mxu0 0.0
    %142 = vmatpush1.msra.mxu0 %v110
    %143 = vmatprep.subr.mxu0 0.0
    %144 = vmatpush1.msra.mxu0 0.0
    %145 = vmatprep.subr.mxu0 0.0
    %146 = vmatpush1.msra.mxu0 0.0
    %147 = vmatprep.subr.mxu0 0.0
    %148 = vmatpush1.msra.mxu0 0.0
    %149 = vmatprep.subr.mxu0 0.0
    %150 = vmatpush1.msra.mxu0 0.0
    %151 = vmatprep.subr.mxu0 0.0
    %152 = vmatpush1.msra.mxu0 0.0
    %153 = vmatprep.subr.mxu0 0.0
    %154 = vmatpush1.msra.mxu0 0.0
    %155 = vmatprep.subr.mxu0 0.0
    %156 = vmatpush1.msra.mxu0 0.0
    %157 = vmatprep.subr.mxu0 0.0
    %158 = vmatpush1.msra.mxu0 0.0
    %159 = vmatprep.subr.mxu0 0.0
    %160 = vmatpush1.msra.mxu0 0.0
    %161 = vmatprep.subr.mxu0 0.0
    %162 = vmatpush1.msra.mxu0 0.0
    %163 = vmatprep.subr.mxu0 0.0
    %164 = vmatpush1.msra.mxu0 0.0
    %165 = vmatprep.subr.mxu0 0.0
    %166 = vmatpush1.msra.mxu0 0.0
    %167 = vmatprep.subr.mxu0 0.0
    %168 = vmatpush1.msra.mxu0 0.0
    %169 = vmatprep.subr.mxu0 0.0
    %170 = vmatpush1.msra.mxu0 0.0
    %171 = vmatprep.subr.mxu0 0.0
    %172 = vmatpush1.msra.mxu0 0.0
    %173 = vmatprep.subr.mxu0 0.0
    %174 = vmatpush1.msra.mxu0 0.0
    %175 = vmatprep.mubr.f32.mxu0 0.0
    %176 = vmatmul.mubr.f32.gmra.mrb[0].mxu0 %v91
    %v177 = vpop.f32.mrb[0].mxu0
    %v178 = vadd.f32 0.0, %v177
    %v179 = vpop.f32.mrb[0].mxu0
    %180 = vdwg.mxu0
    %vm181 = vcmask 15360
    %182 = vst.msk [vmem:[%s4] sm:$0xff] %vm181, %v178
    // Predicated region
    $region14: #{tpu_custom_call.1} parent=1 // pred_check
      _
    $region15: #{tpu_custom_call.1} parent=1 // pred_check_branch
      %184 = sbr.rel (0) target = $region17
    $region16: #{tpu_custom_call.1} parent=1 // pred_region
      %s186 = ssub.s32 128, 128
      %187 = vsyncadd [#allocation3], %s186
      %s189 = sshll.u32 [#allocation2], 4
      %s190 = int_to_ptr.vmem [resolvable:$true] %s189
      %192 = dma.vmem_to_hbm [thread:$0]  %s190, 128, %s3, [#allocation3]
    $region17: #{tpu_custom_call.1} parent=1 // pred_fallthru
      _
    // Predicated region
    $region18: #{tpu_custom_call.1} parent=1 // pred_check
      _
    $region19: #{tpu_custom_call.1} parent=1 // pred_check_branch
      %194 = sbr.rel (0) target = $region21
    $region20: #{tpu_custom_call.1} parent=1 // pred_region
      _
    $region21: #{tpu_custom_call.1} parent=1 // pred_fallthru
      _
    // Predicated region
    $region22: #{tpu_custom_call.1} parent=1 // pred_check
      _
    $region23: #{tpu_custom_call.1} parent=1 // pred_check_branch
      %196 = sbr.rel (0) target = $region25
    $region24: #{tpu_custom_call.1} parent=1 // pred_region
      %197 = dma.done [#allocation3], 128
    $region25: #{tpu_custom_call.1} parent=1 // pred_fallthru
      _
    // Predicated region
    $region26: #{tpu_custom_call.1} parent=1 // pred_check
      _
    $region27: #{tpu_custom_call.1} parent=1 // pred_check_branch
      %199 = sbr.rel (0) target = $region29
    $region28: #{tpu_custom_call.1} parent=1 // pred_region
      _
    $region29: #{tpu_custom_call.1} parent=1 // pred_fallthru
      _
    %200 = vsyncpa [#allocation3], 1

</llo_original>
